<compile_context>
chip_gen: v5e
topology: v5e:2x2
jax: 0.10.0
libtpu: 0.0.40
codegen_flags: <defaults>
</compile_context>

<pallas_src>
import jax
import jax.numpy as jnp
from jax.experimental import pallas as pl
from jax.experimental.pallas import tpu as pltpu


def policy_kernel(
    ems_ref, buf_ref, mask_ref,
    w1e_ref, b1e_ref, w2e_ref, b2e_ref,
    w1b_ref, b1b_ref, w2b_ref, b2b_ref,
    wo_ref, bo_ref,
    out_ref,
):
    ems = ems_ref[...]      # [TB, d_input]   bf16
    buf = buf_ref[...]      # [TB, d_input]   bf16
    mask = mask_ref[...]    # [TB, d_act_pad] bf16 (0/1, exact)

    # ems_list_mlp: Linear -> ReLU -> Linear (bf16 MXU inputs, f32 accumulate)
    h_e = jnp.dot(ems, w1e_ref[...], preferred_element_type=jnp.float32) + b1e_ref[...]
    h_e = jnp.maximum(h_e, 0.0).astype(jnp.bfloat16)
    ems_out = jnp.dot(h_e, w2e_ref[...], preferred_element_type=jnp.float32) + b2e_ref[...]

    # buffer_mlp: Linear -> ReLU -> Linear
    h_b = jnp.dot(buf, w1b_ref[...], preferred_element_type=jnp.float32) + b1b_ref[...]
    h_b = jnp.maximum(h_b, 0.0).astype(jnp.bfloat16)
    buf_out = jnp.dot(h_b, w2b_ref[...], preferred_element_type=jnp.float32) + b2b_ref[...]

    # Elementwise gate in f32 (VPU; v5e has no bf16 VALU), cast once for the MXU.
    combined = (ems_out * buf_out).astype(jnp.bfloat16)             # [TB, d_hidden]
    logits = jnp.dot(combined, wo_ref[...],
                     preferred_element_type=jnp.float32) + bo_ref[...]  # [TB, d_act_pad]

    # f32 softmax over the (lane-dense) action dim; padded columns have a
    # -1e30 bias so exp() underflows to 0 and the denominator is unchanged.
    m = jnp.max(logits, axis=1, keepdims=True)
    e = jnp.exp(logits - m)
    denom = jnp.sum(e, axis=1, keepdims=True)
    probs = e * pl.reciprocal(denom, approx=True)

    out_ref[...] = (probs * mask).astype(out_ref.dtype)


def _round_up(x, m):
    return ((x + m - 1) // m) * m


def policy_network_forward(ems_list_features, buffer_features, action_mask, params, *, tb=None):
    """Fused forward pass. Weights in params are bf16 (w*) / f32 (b*), pre-transposed
    to (d_in, d_out) so the kernel computes y = x @ W + b."""
    B, d_input = ems_list_features.shape
    d_action = action_mask.shape[1]
    d_hidden = params["w1e"].shape[1]

    # ---- Action-dim padding to a multiple of 128 (lane-dense stores / reductions).
    d_act_pad = _round_up(d_action, 128)
    wo, bo = params["wo"], params["bo"]
    if d_act_pad != d_action:
        pad_a = d_act_pad - d_action
        wo = jnp.pad(wo, ((0, 0), (0, pad_a)))
        # Large negative bias for padded action columns keeps the softmax
        # denominator identical to the unpadded model (exp -> 0).
        bo = jnp.pad(bo, ((0, 0), (0, pad_a)), constant_values=-1e30)
        action_mask = jnp.pad(action_mask, ((0, 0), (0, pad_a)))

    # ---- Inputs / mask to bf16 in the wrapper (halves input-side HBM traffic).
    ems_bf = ems_list_features.astype(jnp.bfloat16)
    buf_bf = buffer_features.astype(jnp.bfloat16)
    mask_bf = action_mask.astype(jnp.bfloat16)

    # ---- Batch tile selection.
    # Small B: collapse to a single grid step (weights + batch fit VMEM easily).
    # Large B: 256-row tiles fill the v6e/v7x MXU and megacore shards the grid
    # ("parallel"); pass tb=128 on v5e to match its 128-row MXU pass.
    if tb is None:
        tb = 256
    tb = _round_up(max(16, min(tb, B)), 16)   # bf16 sublane packing: multiple of 16
    b_pad = _round_up(B, tb)
    if b_pad != B:
        pad_b = b_pad - B
        ems_bf = jnp.pad(ems_bf, ((0, pad_b), (0, 0)))
        buf_bf = jnp.pad(buf_bf, ((0, pad_b), (0, 0)))
        mask_bf = jnp.pad(mask_bf, ((0, pad_b), (0, 0)))

    grid = (b_pad // tb,)

    # Batch-streamed activations / mask / output.
    def act_spec(d):
        return pl.BlockSpec((tb, d), lambda i: (i, 0))

    # Weights / biases: full-array blocks, constant index_map (VMEM-resident,
    # loaded once) and single-buffered — no double-buffering for static blocks.
    def resident_spec(shape):
        return pl.BlockSpec(shape, lambda i: (0, 0), pipeline_mode=pl.Buffered(1))

    in_specs = [
        act_spec(d_input), act_spec(d_input), act_spec(d_act_pad),
        resident_spec((d_input, d_hidden)), resident_spec((1, d_hidden)),
        resident_spec((d_hidden, d_hidden)), resident_spec((1, d_hidden)),
        resident_spec((d_input, d_hidden)), resident_spec((1, d_hidden)),
        resident_spec((d_hidden, d_hidden)), resident_spec((1, d_hidden)),
        resident_spec((d_hidden, d_act_pad)), resident_spec((1, d_act_pad)),
    ]
    out_specs = pl.BlockSpec((tb, d_act_pad), lambda i: (i, 0))

    # Advisory cost estimate (kept in sync with bf16 inputs + explicit output bytes).
    mm_macs = 2 * d_input * d_hidden + 2 * d_hidden * d_hidden + d_hidden * d_act_pad
    weight_bytes = 2 * (2 * d_input * d_hidden + 2 * d_hidden * d_hidden + d_hidden * d_act_pad)
    bias_bytes = 4 * (4 * d_hidden + d_act_pad)
    in_bytes = 2 * b_pad * (2 * d_input + d_act_pad)   # bf16 activations + mask
    out_bytes = 4 * b_pad * d_act_pad                  # f32 probabilities
    cost = pl.CostEstimate(
        flops=2 * b_pad * mm_macs,
        transcendentals=b_pad * d_act_pad,
        bytes_accessed=weight_bytes + bias_bytes + in_bytes + out_bytes,
    )

    out = pl.pallas_call(
        policy_kernel,
        out_shape=jax.ShapeDtypeStruct((b_pad, d_act_pad), jnp.float32),
        grid=grid,
        in_specs=in_specs,
        out_specs=out_specs,
        compiler_params=pltpu.CompilerParams(
            dimension_semantics=("parallel",),   # megacore sharding when grid > 1
        ),
        cost_estimate=cost,
    )(
        ems_bf, buf_bf, mask_bf,
        params["w1e"], params["b1e"], params["w2e"], params["b2e"],
        params["w1b"], params["b1b"], params["w2b"], params["b2b"],
        wo, bo,
    )

    return out[:B, :d_action]


def init_params(key, d_input, d_hidden, d_action):
    ks = jax.random.split(key, 5)
    scale = 0.05

    def lin(k, din, dout):
        kw, kb = jax.random.split(k)
        # Weights stored bf16 (halves weight DMA, native MXU path); biases f32.
        w = (scale * jax.random.normal(kw, (din, dout), dtype=jnp.float32)).astype(jnp.bfloat16)
        b = scale * jax.random.normal(kb, (1, dout), dtype=jnp.float32)
        return w, b

    w1e, b1e = lin(ks[0], d_input, d_hidden)
    w2e, b2e = lin(ks[1], d_hidden, d_hidden)
    w1b, b1b = lin(ks[2], d_input, d_hidden)
    w2b, b2b = lin(ks[3], d_hidden, d_hidden)
    wo, bo = lin(ks[4], d_hidden, d_action)
    return dict(w1e=w1e, b1e=b1e, w2e=w2e, b2e=b2e,
                w1b=w1b, b1b=b1b, w2b=w2b, b2b=b2b,
                wo=wo, bo=bo)


def reference_forward(ems, buf, mask, p):
    # Same precision policy as the kernel: bf16 MXU inputs, f32 accumulation,
    # f32 gate + softmax, mask applied after softmax (matches the PyTorch module:
    # softmax then elementwise mask, no renormalization).
    def lin(x, w, b):
        return jnp.dot(x.astype(jnp.bfloat16), w, preferred_element_type=jnp.float32) + b

    h_e = jnp.maximum(lin(ems, p["w1e"], p["b1e"]), 0.0)
    ems_out = lin(h_e, p["w2e"], p["b2e"])
    h_b = jnp.maximum(lin(buf, p["w1b"], p["b1b"]), 0.0)
    buf_out = lin(h_b, p["w2b"], p["b2b"])
    logits = lin(ems_out * buf_out, p["wo"], p["bo"])
    probs = jax.nn.softmax(logits, axis=1)
    return probs * mask


if __name__ == "__main__":
    # Module defaults d_input=128, d_hidden=256; small batch, non-multiple-of-128
    # d_action to exercise the lane-padding path.
    B, d_input, d_hidden, d_action = 16, 128, 256, 100

    key = jax.random.PRNGKey(0)
    k_ems, k_buf, k_mask, k_param = jax.random.split(key, 4)

    ems_list_features = jax.random.normal(k_ems, (B, d_input), dtype=jnp.float32)
    buffer_features = jax.random.normal(k_buf, (B, d_input), dtype=jnp.float32)
    action_mask = (jax.random.uniform(k_mask, (B, d_action)) > 0.5).astype(jnp.float32)

    params = init_params(k_param, d_input, d_hidden, d_action)

    # B=16 -> tb=16 -> grid=(1,): whole problem in one step, weights resident.
    out = policy_network_forward(ems_list_features, buffer_features, action_mask, params)
    out = jax.block_until_ready(out)

    ref = reference_forward(ems_list_features, buffer_features, action_mask, params)
    assert out.shape == (B, d_action)
    # bf16 matmuls + approx reciprocal: tolerance appropriate for softmax probs.
    assert jnp.allclose(out, ref, atol=2e-3, rtol=2e-2), float(jnp.max(jnp.abs(out - ref)))

    print("KERNEL_OK")
</pallas_src>

<mosaic_0001>
module attributes {stable_mosaic.version = 11 : i64} {
  func.func @policy_kernel(%arg0: i32, %arg1: memref<16x128xbf16, #tpu.memory_space<vmem>>, %arg2: memref<16x128xbf16, #tpu.memory_space<vmem>>, %arg3: memref<16x128xbf16, #tpu.memory_space<vmem>>, %arg4: memref<128x256xbf16, #tpu.memory_space<vmem>>, %arg5: memref<1x256xf32, #tpu.memory_space<vmem>>, %arg6: memref<256x256xbf16, #tpu.memory_space<vmem>>, %arg7: memref<1x256xf32, #tpu.memory_space<vmem>>, %arg8: memref<128x256xbf16, #tpu.memory_space<vmem>>, %arg9: memref<1x256xf32, #tpu.memory_space<vmem>>, %arg10: memref<256x256xbf16, #tpu.memory_space<vmem>>, %arg11: memref<1x256xf32, #tpu.memory_space<vmem>>, %arg12: memref<256x128xbf16, #tpu.memory_space<vmem>>, %arg13: memref<1x128xf32, #tpu.memory_space<vmem>>, %arg14: memref<16x128xf32, #tpu.memory_space<vmem>>) attributes {dimension_semantics = [#tpu.dimension_semantics<parallel>], iteration_bounds = array<i64: 1>, scalar_prefetch = 0 : i64, scratch_operands = 0 : i64, tpu.core_type = #tpu.core_type<tc>, window_params = [{transform_indices = @transform_0, window_bounds = array<i64: 16, 128>}, {transform_indices = @transform_1, window_bounds = array<i64: 16, 128>}, {transform_indices = @transform_2, window_bounds = array<i64: 16, 128>}, {pipeline_mode = #tpu.pipeline_mode<synchronous>, transform_indices = @transform_3, window_bounds = array<i64: 128, 256>}, {pipeline_mode = #tpu.pipeline_mode<synchronous>, transform_indices = @transform_4, window_bounds = array<i64: 1, 256>}, {pipeline_mode = #tpu.pipeline_mode<synchronous>, transform_indices = @transform_5, window_bounds = array<i64: 256, 256>}, {pipeline_mode = #tpu.pipeline_mode<synchronous>, transform_indices = @transform_6, window_bounds = array<i64: 1, 256>}, {pipeline_mode = #tpu.pipeline_mode<synchronous>, transform_indices = @transform_7, window_bounds = array<i64: 128, 256>}, {pipeline_mode = #tpu.pipeline_mode<synchronous>, transform_indices = @transform_8, window_bounds = array<i64: 1, 256>}, {pipeline_mode = #tpu.pipeline_mode<synchronous>, transform_indices = @transform_9, window_bounds = array<i64: 256, 256>}, {pipeline_mode = #tpu.pipeline_mode<synchronous>, transform_indices = @transform_10, window_bounds = array<i64: 1, 256>}, {pipeline_mode = #tpu.pipeline_mode<synchronous>, transform_indices = @transform_11, window_bounds = array<i64: 256, 128>}, {pipeline_mode = #tpu.pipeline_mode<synchronous>, transform_indices = @transform_12, window_bounds = array<i64: 1, 128>}, {transform_indices = @transform_13, window_bounds = array<i64: 16, 128>}]} {
    %c0 = arith.constant 0 : index
    %c0_0 = arith.constant 0 : index
    %0 = vector.load %arg1[%c0, %c0_0] : memref<16x128xbf16, #tpu.memory_space<vmem>>, vector<16x128xbf16>
    %c0_1 = arith.constant 0 : index
    %c0_2 = arith.constant 0 : index
    %1 = vector.load %arg2[%c0_1, %c0_2] : memref<16x128xbf16, #tpu.memory_space<vmem>>, vector<16x128xbf16>
    %c0_3 = arith.constant 0 : index
    %c0_4 = arith.constant 0 : index
    %2 = vector.load %arg3[%c0_3, %c0_4] : memref<16x128xbf16, #tpu.memory_space<vmem>>, vector<16x128xbf16>
    %c0_5 = arith.constant 0 : index
    %c0_6 = arith.constant 0 : index
    %3 = vector.load %arg4[%c0_5, %c0_6] : memref<128x256xbf16, #tpu.memory_space<vmem>>, vector<128x256xbf16>
    %cst = arith.constant dense<0.000000e+00> : vector<16x256xf32>
    %4 = tpu.matmul %0, %3, %cst {dimension_numbers = #tpu.dot_dimension_numbers<[1], [0], [0], [1], [0, 0, 1, 1], [], []>} : vector<16x128xbf16>, vector<128x256xbf16>, vector<16x256xf32> -> vector<16x256xf32>
    %c0_7 = arith.constant 0 : index
    %c0_8 = arith.constant 0 : index
    %5 = vector.load %arg5[%c0_7, %c0_8] : memref<1x256xf32, #tpu.memory_space<vmem>>, vector<1x256xf32>
    %6 = vector.broadcast %5 : vector<1x256xf32> to vector<16x256xf32>
    %7 = arith.addf %4, %6 : vector<16x256xf32>
    %cst_9 = arith.constant 0.000000e+00 : f32
    %8 = vector.broadcast %cst_9 : f32 to vector<16x256xf32>
    %9 = arith.maximumf %7, %8 : vector<16x256xf32>
    %10 = arith.truncf %9 : vector<16x256xf32> to vector<16x256xbf16>
    %c0_10 = arith.constant 0 : index
    %c0_11 = arith.constant 0 : index
    %11 = vector.load %arg6[%c0_10, %c0_11] : memref<256x256xbf16, #tpu.memory_space<vmem>>, vector<256x256xbf16>
    %cst_12 = arith.constant dense<0.000000e+00> : vector<16x256xf32>
    %12 = tpu.matmul %10, %11, %cst_12 {dimension_numbers = #tpu.dot_dimension_numbers<[1], [0], [0], [1], [0, 0, 1, 1], [], []>} : vector<16x256xbf16>, vector<256x256xbf16>, vector<16x256xf32> -> vector<16x256xf32>
    %c0_13 = arith.constant 0 : index
    %c0_14 = arith.constant 0 : index
    %13 = vector.load %arg7[%c0_13, %c0_14] : memref<1x256xf32, #tpu.memory_space<vmem>>, vector<1x256xf32>
    %14 = vector.broadcast %13 : vector<1x256xf32> to vector<16x256xf32>
    %15 = arith.addf %12, %14 : vector<16x256xf32>
    %c0_15 = arith.constant 0 : index
    %c0_16 = arith.constant 0 : index
    %16 = vector.load %arg8[%c0_15, %c0_16] : memref<128x256xbf16, #tpu.memory_space<vmem>>, vector<128x256xbf16>
    %cst_17 = arith.constant dense<0.000000e+00> : vector<16x256xf32>
    %17 = tpu.matmul %1, %16, %cst_17 {dimension_numbers = #tpu.dot_dimension_numbers<[1], [0], [0], [1], [0, 0, 1, 1], [], []>} : vector<16x128xbf16>, vector<128x256xbf16>, vector<16x256xf32> -> vector<16x256xf32>
    %c0_18 = arith.constant 0 : index
    %c0_19 = arith.constant 0 : index
    %18 = vector.load %arg9[%c0_18, %c0_19] : memref<1x256xf32, #tpu.memory_space<vmem>>, vector<1x256xf32>
    %19 = vector.broadcast %18 : vector<1x256xf32> to vector<16x256xf32>
    %20 = arith.addf %17, %19 : vector<16x256xf32>
    %cst_20 = arith.constant 0.000000e+00 : f32
    %21 = vector.broadcast %cst_20 : f32 to vector<16x256xf32>
    %22 = arith.maximumf %20, %21 : vector<16x256xf32>
    %23 = arith.truncf %22 : vector<16x256xf32> to vector<16x256xbf16>
    %c0_21 = arith.constant 0 : index
    %c0_22 = arith.constant 0 : index
    %24 = vector.load %arg10[%c0_21, %c0_22] : memref<256x256xbf16, #tpu.memory_space<vmem>>, vector<256x256xbf16>
    %cst_23 = arith.constant dense<0.000000e+00> : vector<16x256xf32>
    %25 = tpu.matmul %23, %24, %cst_23 {dimension_numbers = #tpu.dot_dimension_numbers<[1], [0], [0], [1], [0, 0, 1, 1], [], []>} : vector<16x256xbf16>, vector<256x256xbf16>, vector<16x256xf32> -> vector<16x256xf32>
    %c0_24 = arith.constant 0 : index
    %c0_25 = arith.constant 0 : index
    %26 = vector.load %arg11[%c0_24, %c0_25] : memref<1x256xf32, #tpu.memory_space<vmem>>, vector<1x256xf32>
    %27 = vector.broadcast %26 : vector<1x256xf32> to vector<16x256xf32>
    %28 = arith.addf %25, %27 : vector<16x256xf32>
    %29 = arith.mulf %15, %28 : vector<16x256xf32>
    %30 = arith.truncf %29 : vector<16x256xf32> to vector<16x256xbf16>
    %c0_26 = arith.constant 0 : index
    %c0_27 = arith.constant 0 : index
    %31 = vector.load %arg12[%c0_26, %c0_27] : memref<256x128xbf16, #tpu.memory_space<vmem>>, vector<256x128xbf16>
    %cst_28 = arith.constant dense<0.000000e+00> : vector<16x128xf32>
    %32 = tpu.matmul %30, %31, %cst_28 {dimension_numbers = #tpu.dot_dimension_numbers<[1], [0], [0], [1], [0, 0, 1, 1], [], []>} : vector<16x256xbf16>, vector<256x128xbf16>, vector<16x128xf32> -> vector<16x128xf32>
    %c0_29 = arith.constant 0 : index
    %c0_30 = arith.constant 0 : index
    %33 = vector.load %arg13[%c0_29, %c0_30] : memref<1x128xf32, #tpu.memory_space<vmem>>, vector<1x128xf32>
    %34 = vector.broadcast %33 : vector<1x128xf32> to vector<16x128xf32>
    %35 = arith.addf %32, %34 : vector<16x128xf32>
    %cst_31 = arith.constant dense<0xFF800000> : vector<16xf32>
    %36 = vector.multi_reduction <maximumf>, %35, %cst_31 [1] : vector<16x128xf32> to vector<16xf32>
    %37 = vector.shape_cast %36 : vector<16xf32> to vector<16x1xf32>
    %38 = vector.broadcast %37 : vector<16x1xf32> to vector<16x128xf32>
    %39 = arith.subf %35, %38 : vector<16x128xf32>
    %40 = math.exp %39 : vector<16x128xf32>
    %cst_32 = arith.constant dense<0.000000e+00> : vector<16xf32>
    %41 = vector.multi_reduction <add>, %40, %cst_32 [1] : vector<16x128xf32> to vector<16xf32>
    %42 = vector.shape_cast %41 : vector<16xf32> to vector<16x1xf32>
    %43 = tpu.reciprocal %42 {approx = true} : vector<16x1xf32> -> vector<16x1xf32>
    %44 = vector.broadcast %43 : vector<16x1xf32> to vector<16x128xf32>
    %45 = arith.mulf %40, %44 : vector<16x128xf32>
    %46 = arith.extf %2 : vector<16x128xbf16> to vector<16x128xf32>
    %47 = arith.mulf %45, %46 : vector<16x128xf32>
    %c0_33 = arith.constant 0 : index
    %c0_34 = arith.constant 0 : index
    %48 = vector.load %arg14[%c0_33, %c0_34] : memref<16x128xf32, #tpu.memory_space<vmem>>, vector<16x128xf32>
    tpu.vector_store %arg14[%c0_33, %c0_34], %47 {strides = array<i32>} : memref<16x128xf32, #tpu.memory_space<vmem>>, vector<16x128xf32>,
    return
  }
  func.func @transform_0(%arg0: i32) -> (i32, i32) {
    %c0_i32 = arith.constant 0 : i32
    %c0_i32_0 = arith.constant 0 : i32
    return %arg0, %c0_i32 : i32, i32
  }
  func.func @transform_1(%arg0: i32) -> (i32, i32) {
    %c0_i32 = arith.constant 0 : i32
    %c0_i32_0 = arith.constant 0 : i32
    return %arg0, %c0_i32 : i32, i32
  }
  func.func @transform_2(%arg0: i32) -> (i32, i32) {
    %c0_i32 = arith.constant 0 : i32
    %c0_i32_0 = arith.constant 0 : i32
    return %arg0, %c0_i32 : i32, i32
  }
  func.func @transform_3(%arg0: i32) -> (i32, i32) {
    %c0_i32 = arith.constant 0 : i32
    %c0_i32_0 = arith.constant 0 : i32
    %c0_i32_1 = arith.constant 0 : i32
    return %c0_i32, %c0_i32_0 : i32, i32
  }
  func.func @transform_4(%arg0: i32) -> (i32, i32) {
    %c0_i32 = arith.constant 0 : i32
    %c0_i32_0 = arith.constant 0 : i32
    %c0_i32_1 = arith.constant 0 : i32
    return %c0_i32, %c0_i32_0 : i32, i32
  }
  func.func @transform_5(%arg0: i32) -> (i32, i32) {
    %c0_i32 = arith.constant 0 : i32
    %c0_i32_0 = arith.constant 0 : i32
    %c0_i32_1 = arith.constant 0 : i32
    return %c0_i32, %c0_i32_0 : i32, i32
  }
  func.func @transform_6(%arg0: i32) -> (i32, i32) {
    %c0_i32 = arith.constant 0 : i32
    %c0_i32_0 = arith.constant 0 : i32
    %c0_i32_1 = arith.constant 0 : i32
    return %c0_i32, %c0_i32_0 : i32, i32
  }
  func.func @transform_7(%arg0: i32) -> (i32, i32) {
    %c0_i32 = arith.constant 0 : i32
    %c0_i32_0 = arith.constant 0 : i32
    %c0_i32_1 = arith.constant 0 : i32
    return %c0_i32, %c0_i32_0 : i32, i32
  }
  func.func @transform_8(%arg0: i32) -> (i32, i32) {
    %c0_i32 = arith.constant 0 : i32
    %c0_i32_0 = arith.constant 0 : i32
    %c0_i32_1 = arith.constant 0 : i32
    return %c0_i32, %c0_i32_0 : i32, i32
  }
  func.func @transform_9(%arg0: i32) -> (i32, i32) {
    %c0_i32 = arith.constant 0 : i32
    %c0_i32_0 = arith.constant 0 : i32
    %c0_i32_1 = arith.constant 0 : i32
    return %c0_i32, %c0_i32_0 : i32, i32
  }
  func.func @transform_10(%arg0: i32) -> (i32, i32) {
    %c0_i32 = arith.constant 0 : i32
    %c0_i32_0 = arith.constant 0 : i32
    %c0_i32_1 = arith.constant 0 : i32
    return %c0_i32, %c0_i32_0 : i32, i32
  }
  func.func @transform_11(%arg0: i32) -> (i32, i32) {
    %c0_i32 = arith.constant 0 : i32
    %c0_i32_0 = arith.constant 0 : i32
    %c0_i32_1 = arith.constant 0 : i32
    return %c0_i32, %c0_i32_0 : i32, i32
  }
  func.func @transform_12(%arg0: i32) -> (i32, i32) {
    %c0_i32 = arith.constant 0 : i32
    %c0_i32_0 = arith.constant 0 : i32
    %c0_i32_1 = arith.constant 0 : i32
    return %c0_i32, %c0_i32_0 : i32, i32
  }
  func.func @transform_13(%arg0: i32) -> (i32, i32) {
    %c0_i32 = arith.constant 0 : i32
    %c0_i32_0 = arith.constant 0 : i32
    return %arg0, %c0_i32 : i32, i32
  }
}

</mosaic_0001>

<llo_original>
// kernel: tpu_custom_call.1
$region0: #{tpu_custom_call.1}
  #allocation0 [shape = 'u32[]', space=smem, size = 0x4, offset = 0x4, fixed_abs, tag = 'smem constant byte address 0x4 - core index']
  #allocation1 [shape = 'u32[72,128]{1,0:T(1,128)}', space=vmem, size = 0x9000, scoped, tag = 'internal scratch']
  %s0 = inlined_call_operand.hbm [shape: bf16[16,128], index: 0, kind: input, shape index: {}]
  %s1 = inlined_call_operand.hbm [shape: bf16[16,128], index: 1, kind: input, shape index: {}]
  %s2 = inlined_call_operand.hbm [shape: bf16[16,128], index: 2, kind: input, shape index: {}]
  %s3 = inlined_call_operand.hbm [shape: bf16[128,256], index: 3, kind: input, shape index: {}]
  %s4 = inlined_call_operand.vmem [shape: f32[1,256], index: 4, kind: input, shape index: {}]
  %s5 = inlined_call_operand.hbm [shape: bf16[256,256], index: 5, kind: input, shape index: {}]
  %s6 = inlined_call_operand.vmem [shape: f32[1,256], index: 6, kind: input, shape index: {}]
  %s7 = inlined_call_operand.hbm [shape: bf16[128,256], index: 7, kind: input, shape index: {}]
  %s8 = inlined_call_operand.vmem [shape: f32[1,256], index: 8, kind: input, shape index: {}]
  %s9 = inlined_call_operand.hbm [shape: bf16[256,256], index: 9, kind: input, shape index: {}]
  %s10 = inlined_call_operand.vmem [shape: f32[1,256], index: 10, kind: input, shape index: {}]
  %s11 = inlined_call_operand.hbm [shape: bf16[256,128], index: 11, kind: input, shape index: {}]
  %s12 = inlined_call_operand.vmem [shape: f32[1,128], index: 12, kind: input, shape index: {}]
  %s13 = inlined_call_operand.hbm [shape: f32[16,128], index: 13, kind: output, shape index: {}]
  %s14 = sld [smem:[#allocation0]]
  $region94: #{tpu_custom_call.1} parent=0
    _
  %s16 = ssub.s32 1, %s14
  %s17 = scalar_select 0, %s16, %s14
  $region1: #{tpu_custom_call.1} parent=0
    #allocation2 [shape = 'u8[4096]{0}', space=vmem, size = 0x1000, scoped, tag = 'input window, operand 0, single buffered']
    #allocation3 [shape = 's32[1]{0}', space=sflag, size = 0x4, scoped, tag = 'scoped memory for tpu_custom_call.1']
    #allocation4 [shape = 's32[1]{0}', space=sflag, size = 0x4, scoped, tag = 'scoped memory for tpu_custom_call.1']
    #allocation5 [shape = 'u8[4096]{0}', space=vmem, size = 0x1000, scoped, tag = 'input window, operand 1, single buffered']
    #allocation6 [shape = 's32[1]{0}', space=sflag, size = 0x4, scoped, tag = 'scoped memory for tpu_custom_call.1']
    #allocation7 [shape = 'u8[4096]{0}', space=vmem, size = 0x1000, scoped, tag = 'input window, operand 2, single buffered']
    #allocation8 [shape = 'u8[65536]{0}', space=vmem, size = 0x10000, scoped, tag = 'input window, operand 3, single buffered']
    #allocation9 [shape = 's32[1]{0}', space=sflag, size = 0x4, scoped, tag = 'scoped memory for tpu_custom_call.1']
    #allocation10 [shape = 'u8[131072]{0}', space=vmem, size = 0x20000, scoped, tag = 'input window, operand 5, single buffered']
    #allocation11 [shape = 'u8[65536]{0}', space=vmem, size = 0x10000, scoped, tag = 'input window, operand 7, single buffered']
    #allocation12 [shape = 's32[1]{0}', space=sflag, size = 0x4, scoped, tag = 'scoped memory for tpu_custom_call.1']
    #allocation13 [shape = 'u8[131072]{0}', space=vmem, size = 0x20000, scoped, tag = 'input window, operand 9, single buffered']
    #allocation14 [shape = 'u8[65536]{0}', space=vmem, size = 0x10000, scoped, tag = 'input window, operand 11, single buffered']
    #allocation15 [shape = 's32[1]{0}', space=sflag, size = 0x4, scoped, tag = 'scoped memory for tpu_custom_call.1']
    #allocation16 [shape = 'u8[8192]{0}', space=vmem, size = 0x2000, scoped, tag = 'output window, operand 0, single buffered']
    %18 = vsyncpa [#allocation3], 0
    %19 = vsyncpa [#allocation6], 0
    %20 = vsyncpa [#allocation9], 0
    %21 = vsyncpa [#allocation12], 0
    %22 = vsyncpa [#allocation15], 0
    %23 = vsyncpa [#allocation4], 0
    // Predicated region
    $region2: #{tpu_custom_call.1} parent=1 // pred_check
      _
    $region3: #{tpu_custom_call.1} parent=1 // pred_check_branch
      %25 = sbr.rel (0) target = $region5
    $region4: #{tpu_custom_call.1} parent=1 // pred_region
      %27 = vsyncadd [#allocation3], 0
      %s28 = sshll.u32 %s0, 4
      %s29 = int_to_ptr.hbm [resolvable:$true] %s28
      %s30 = sshll.u32 [#allocation2], 4
      %s31 = int_to_ptr.vmem [resolvable:$true] %s30
      %36 = dma.hbm_to_vmem [thread:$0]  %s29, 128, %s31, [#allocation3], 64, 64, 4
    $region5: #{tpu_custom_call.1} parent=1 // pred_fallthru
      _
    // Predicated region
    $region6: #{tpu_custom_call.1} parent=1 // pred_check
      _
    $region7: #{tpu_custom_call.1} parent=1 // pred_check_branch
      %38 = sbr.rel (0) target = $region9
    $region8: #{tpu_custom_call.1} parent=1 // pred_region
      %40 = vsyncadd [#allocation6], 0
      %s41 = sshll.u32 %s1, 4
      %s42 = int_to_ptr.hbm [resolvable:$true] %s41
      %s43 = sshll.u32 [#allocation5], 4
      %s44 = int_to_ptr.vmem [resolvable:$true] %s43
      %49 = dma.hbm_to_vmem [thread:$0]  %s42, 128, %s44, [#allocation6], 64, 64, 4
    $region9: #{tpu_custom_call.1} parent=1 // pred_fallthru
      _
    // Predicated region
    $region10: #{tpu_custom_call.1} parent=1 // pred_check
      _
    $region11: #{tpu_custom_call.1} parent=1 // pred_check_branch
      %51 = sbr.rel (0) target = $region13
    $region12: #{tpu_custom_call.1} parent=1 // pred_region
      %53 = vsyncadd [#allocation6], 0
      %s54 = sshll.u32 %s2, 4
      %s55 = int_to_ptr.hbm [resolvable:$true] %s54
      %s56 = sshll.u32 [#allocation7], 4
      %s57 = int_to_ptr.vmem [resolvable:$true] %s56
      %62 = dma.hbm_to_vmem [thread:$0]  %s55, 128, %s57, [#allocation6], 64, 64, 4
    $region13: #{tpu_custom_call.1} parent=1 // pred_fallthru
      _
    // Predicated region
    $region14: #{tpu_custom_call.1} parent=1 // pred_check
      _
    $region15: #{tpu_custom_call.1} parent=1 // pred_check_branch
      %64 = sbr.rel (0) target = $region17
    $region16: #{tpu_custom_call.1} parent=1 // pred_region
      %66 = vsyncadd [#allocation9], 0
      %s67 = sshll.u32 %s3, 4
      %s68 = int_to_ptr.hbm [resolvable:$true] %s67
      %s69 = sshll.u32 [#allocation8], 4
      %s70 = int_to_ptr.vmem [resolvable:$true] %s69
      %75 = dma.hbm_to_vmem [thread:$0]  %s68, 2048, %s70, [#allocation9], 128, 128, 8
    $region17: #{tpu_custom_call.1} parent=1 // pred_fallthru
      _
    // Predicated region
    $region18: #{tpu_custom_call.1} parent=1 // pred_check
      _
    $region19: #{tpu_custom_call.1} parent=1 // pred_check_branch
      %77 = sbr.rel (0) target = $region21
    $region20: #{tpu_custom_call.1} parent=1 // pred_region
      _
    $region21: #{tpu_custom_call.1} parent=1 // pred_fallthru
      _
    // Predicated region
    $region22: #{tpu_custom_call.1} parent=1 // pred_check
      _
    $region23: #{tpu_custom_call.1} parent=1 // pred_check_branch
      %79 = sbr.rel (0) target = $region25
    $region24: #{tpu_custom_call.1} parent=1 // pred_region
      %81 = vsyncadd [#allocation9], 0
      %s82 = sshll.u32 %s5, 4
      %s83 = int_to_ptr.hbm [resolvable:$true] %s82
      %s84 = sshll.u32 [#allocation10], 4
      %s85 = int_to_ptr.vmem [resolvable:$true] %s84
      %90 = dma.hbm_to_vmem [thread:$0]  %s83, 4096, %s85, [#allocation9], 128, 128, 8
    $region25: #{tpu_custom_call.1} parent=1 // pred_fallthru
      _
    // Predicated region
    $region26: #{tpu_custom_call.1} parent=1 // pred_check
      _
    $region27: #{tpu_custom_call.1} parent=1 // pred_check_branch
      %92 = sbr.rel (0) target = $region29
    $region28: #{tpu_custom_call.1} parent=1 // pred_region
      _
    $region29: #{tpu_custom_call.1} parent=1 // pred_fallthru
      _
    // Predicated region
    $region30: #{tpu_custom_call.1} parent=1 // pred_check
      _
    $region31: #{tpu_custom_call.1} parent=1 // pred_check_branch
      %94 = sbr.rel (0) target = $region33
    $region32: #{tpu_custom_call.1} parent=1 // pred_region
      %96 = vsyncadd [#allocation12], 0
      %s97 = sshll.u32 %s7, 4
      %s98 = int_to_ptr.hbm [resolvable:$true] %s97
      %s99 = sshll.u32 [#allocation11], 4
      %s100 = int_to_ptr.vmem [resolvable:$true] %s99
      %105 = dma.hbm_to_vmem [thread:$0]  %s98, 2048, %s100, [#allocation12], 128, 128, 8
    $region33: #{tpu_custom_call.1} parent=1 // pred_fallthru
      _
    // Predicated region
    $region34: #{tpu_custom_call.1} parent=1 // pred_check
      _
    $region35: #{tpu_custom_call.1} parent=1 // pred_check_branch
      %107 = sbr.rel (0) target = $region37
    $region36: #{tpu_custom_call.1} parent=1 // pred_region
      _
    $region37: #{tpu_custom_call.1} parent=1 // pred_fallthru
      _
    // Predicated region
    $region38: #{tpu_custom_call.1} parent=1 // pred_check
      _
    $region39: #{tpu_custom_call.1} parent=1 // pred_check_branch
      %109 = sbr.rel (0) target = $region41
    $region40: #{tpu_custom_call.1} parent=1 // pred_region
      %111 = vsyncadd [#allocation12], 0
      %s112 = sshll.u32 %s9, 4
      %s113 = int_to_ptr.hbm [resolvable:$true] %s112
      %s114 = sshll.u32 [#allocation13], 4
      %s115 = int_to_ptr.vmem [resolvable:$true] %s114
      %120 = dma.hbm_to_vmem [thread:$0]  %s113, 4096, %s115, [#allocation12], 128, 128, 8
    $region41: #{tpu_custom_call.1} parent=1 // pred_fallthru
      _
    // Predicated region
    $region42: #{tpu_custom_call.1} parent=1 // pred_check
      _
    $region43: #{tpu_custom_call.1} parent=1 // pred_check_branch
      %122 = sbr.rel (0) target = $region45
    $region44: #{tpu_custom_call.1} parent=1 // pred_region
      _
    $region45: #{tpu_custom_call.1} parent=1 // pred_fallthru
      _
    // Predicated region
    $region46: #{tpu_custom_call.1} parent=1 // pred_check
      _
    $region47: #{tpu_custom_call.1} parent=1 // pred_check_branch
      %124 = sbr.rel (0) target = $region49
    $region48: #{tpu_custom_call.1} parent=1 // pred_region
      %126 = vsyncadd [#allocation15], 0
      %s127 = sshll.u32 %s11, 4
      %s128 = int_to_ptr.hbm [resolvable:$true] %s127
      %s129 = sshll.u32 [#allocation14], 4
      %s130 = int_to_ptr.vmem [resolvable:$true] %s129
      %135 = dma.hbm_to_vmem [thread:$0]  %s128, 2048, %s130, [#allocation15], 64, 64, 4
    $region49: #{tpu_custom_call.1} parent=1 // pred_fallthru
      _
    // Predicated region
    $region50: #{tpu_custom_call.1} parent=1 // pred_check
      _
    $region51: #{tpu_custom_call.1} parent=1 // pred_check_branch
      %137 = sbr.rel (0) target = $region53
    $region52: #{tpu_custom_call.1} parent=1 // pred_region
      _
    $region53: #{tpu_custom_call.1} parent=1 // pred_fallthru
      _
    // Predicated region
    $region54: #{tpu_custom_call.1} parent=1 // pred_check
      _
    $region55: #{tpu_custom_call.1} parent=1 // pred_check_branch
      %139 = sbr.rel (0) target = $region57
    $region56: #{tpu_custom_call.1} parent=1 // pred_region
      %141 = dma.done [#allocation3], 128
    $region57: #{tpu_custom_call.1} parent=1 // pred_fallthru
      _
    // Predicated region
    $region58: #{tpu_custom_call.1} parent=1 // pred_check
      _
    $region59: #{tpu_custom_call.1} parent=1 // pred_check_branch
      %143 = sbr.rel (0) target = $region61
    $region60: #{tpu_custom_call.1} parent=1 // pred_region
      %145 = dma.done [#allocation6], 128
    $region61: #{tpu_custom_call.1} parent=1 // pred_fallthru
      _
    // Predicated region
    $region62: #{tpu_custom_call.1} parent=1 // pred_check
      _
    $region63: #{tpu_custom_call.1} parent=1 // pred_check_branch
      %147 = sbr.rel (0) target = $region65
    $region64: #{tpu_custom_call.1} parent=1 // pred_region
      %149 = dma.done [#allocation6], 128
    $region65: #{tpu_custom_call.1} parent=1 // pred_fallthru
      _
    // Predicated region
    $region66: #{tpu_custom_call.1} parent=1 // pred_check
      _
    $region67: #{tpu_custom_call.1} parent=1 // pred_check_branch
      %151 = sbr.rel (0) target = $region69
    $region68: #{tpu_custom_call.1} parent=1 // pred_region
      %153 = dma.done [#allocation9], 2048
    $region69: #{tpu_custom_call.1} parent=1 // pred_fallthru
      _
    // Predicated region
    $region70: #{tpu_custom_call.1} parent=1 // pred_check
      _
    $region71: #{tpu_custom_call.1} parent=1 // pred_check_branch
      %155 = sbr.rel (0) target = $region73
    $region72: #{tpu_custom_call.1} parent=1 // pred_region
      %157 = dma.done [#allocation9], 4096
    $region73: #{tpu_custom_call.1} parent=1 // pred_fallthru
      _
    // Predicated region
    $region74: #{tpu_custom_call.1} parent=1 // pred_check
      _
    $region75: #{tpu_custom_call.1} parent=1 // pred_check_branch
      %159 = sbr.rel (0) target = $region77
    $region76: #{tpu_custom_call.1} parent=1 // pred_region
      %161 = dma.done [#allocation12], 2048
    $region77: #{tpu_custom_call.1} parent=1 // pred_fallthru
      _
    // Predicated region
    $region78: #{tpu_custom_call.1} parent=1 // pred_check
      _
    $region79: #{tpu_custom_call.1} parent=1 // pred_check_branch
      %163 = sbr.rel (0) target = $region81
    $region80: #{tpu_custom_call.1} parent=1 // pred_region
      %165 = dma.done [#allocation12], 4096
    $region81: #{tpu_custom_call.1} parent=1 // pred_fallthru
      _
    // Predicated region
    $region82: #{tpu_custom_call.1} parent=1 // pred_check
      _
    $region83: #{tpu_custom_call.1} parent=1 // pred_check_branch
      %167 = sbr.rel (0) target = $region85
    $region84: #{tpu_custom_call.1} parent=1 // pred_region
      %169 = dma.done [#allocation15], 2048
    $region85: #{tpu_custom_call.1} parent=1 // pred_fallthru
      _
    %v170 = vld [vmem:[#allocation2] sm:$0xf]
    %v171 = vld [vmem:[#allocation2 + $0x4] sm:$0xf]
    %v172 = vld [vmem:[#allocation5] sm:$0xf]
    %v173 = vld [vmem:[#allocation5 + $0x4] sm:$0xf]
    %v174 = vld [vmem:[#allocation7] sm:$0xf]
    %v175 = vld [vmem:[#allocation7 + $0x4] sm:$0xf]
    %v176 = vld [vmem:[#allocation8] sm:$0xff]
    %v177 = vld [vmem:[#allocation8 + $0x8] sm:$0xff]
    %v178 = vld [vmem:[#allocation8 + $0x10] sm:$0xff]
    %v179 = vld [vmem:[#allocation8 + $0x18] sm:$0xff]
    %v180 = vld [vmem:[#allocation8 + $0x20] sm:$0xff]
    %v181 = vld [vmem:[#allocation8 + $0x28] sm:$0xff]
    %v182 = vld [vmem:[#allocation8 + $0x30] sm:$0xff]
    %v183 = vld [vmem:[#allocation8 + $0x38] sm:$0xff]
    %v184 = vld [vmem:[#allocation8 + $0x40] sm:$0xff]
    %v185 = vld [vmem:[#allocation8 + $0x48] sm:$0xff]
    %v186 = vld [vmem:[#allocation8 + $0x50] sm:$0xff]
    %v187 = vld [vmem:[#allocation8 + $0x58] sm:$0xff]
    %v188 = vld [vmem:[#allocation8 + $0x60] sm:$0xff]
    %v189 = vld [vmem:[#allocation8 + $0x68] sm:$0xff]
    %v190 = vld [vmem:[#allocation8 + $0x70] sm:$0xff]
    %v191 = vld [vmem:[#allocation8 + $0x78] sm:$0xff]
    %v192 = vld [vmem:[%s4] sm:$0x3]
    %v194 = vperm.slane %v192, 0
    %v195 = vperm.slane %v192, 1
    %v200 = vunpack.c.l.b16 %v170
    %v201 = vunpack.c.l.b16 %v171
    %v202 = vpack.c.b16 %v201, %v200
    %v220 = vunpack.c.l.b16 %v176
    %v221 = vunpack.c.h.b16 %v176
    %v222 = vunpack.c.l.b16 %v177
    %v223 = vunpack.c.h.b16 %v177
    %v224 = vunpack.c.l.b16 %v178
    %v225 = vunpack.c.h.b16 %v178
    %v226 = vunpack.c.l.b16 %v179
    %v227 = vunpack.c.h.b16 %v179
    %v228 = vunpack.c.l.b16 %v180
    %v229 = vunpack.c.h.b16 %v180
    %v230 = vunpack.c.l.b16 %v181
    %v231 = vunpack.c.h.b16 %v181
    %v232 = vunpack.c.l.b16 %v182
    %v233 = vunpack.c.h.b16 %v182
    %v234 = vunpack.c.l.b16 %v183
    %v235 = vunpack.c.h.b16 %v183
    %v236 = vunpack.c.l.b16 %v184
    %v237 = vunpack.c.h.b16 %v184
    %v238 = vunpack.c.l.b16 %v185
    %v239 = vunpack.c.h.b16 %v185
    %v240 = vunpack.c.l.b16 %v186
    %v241 = vunpack.c.h.b16 %v186
    %v242 = vunpack.c.l.b16 %v187
    %v243 = vunpack.c.h.b16 %v187
    %v244 = vunpack.c.l.b16 %v188
    %v245 = vunpack.c.h.b16 %v188
    %v246 = vunpack.c.l.b16 %v189
    %v247 = vunpack.c.h.b16 %v189
    %v248 = vunpack.c.l.b16 %v190
    %v249 = vunpack.c.h.b16 %v190
    %v250 = vunpack.c.l.b16 %v191
    %v251 = vunpack.c.h.b16 %v191
    %v252 = vpack.c.b16 %v222, %v220
    %v253 = vpack.c.b16 %v223, %v221
    %v254 = vpack.c.b16 %v226, %v224
    %v255 = vpack.c.b16 %v227, %v225
    %v256 = vpack.c.b16 %v230, %v228
    %v257 = vpack.c.b16 %v231, %v229
    %v258 = vpack.c.b16 %v234, %v232
    %v259 = vpack.c.b16 %v235, %v233
    %v260 = vpack.c.b16 %v238, %v236
    %v261 = vpack.c.b16 %v239, %v237
    %v262 = vpack.c.b16 %v242, %v240
    %v263 = vpack.c.b16 %v243, %v241
    %v264 = vpack.c.b16 %v246, %v244
    %v265 = vpack.c.b16 %v247, %v245
    %v266 = vpack.c.b16 %v250, %v248
    %v267 = vpack.c.b16 %v251, %v249
    %284 = vmatpush.bf16.msra.mxu0 %v266
    %285 = vmatpush.bf16.msra.mxu0 %v264
    %286 = vmatpush.bf16.msra.mxu0 %v262
    %287 = vmatpush.bf16.msra.mxu0 %v260
    %288 = vmatpush.bf16.msra.mxu0 %v258
    %289 = vmatpush.bf16.msra.mxu0 %v256
    %290 = vmatpush.bf16.msra.mxu0 %v254
    %291 = vmatpush.bf16.msra.mxu0 %v252
    %292 = vmatmul.bf16.gmra.mxu0 %v202
    %v293 = vpop.f32.mrf.mxu0
    %v294 = vadd.f32 %v194, %v293
    %v295 = vpop.f32.mrf.mxu0
    %v296 = vadd.f32 %v194, %v295
    %297 = vdwg.mxu0
    %298 = vmatpush.bf16.msra.mxu0 %v267
    %299 = vmatpush.bf16.msra.mxu0 %v265
    %300 = vmatpush.bf16.msra.mxu0 %v263
    %301 = vmatpush.bf16.msra.mxu0 %v261
    %302 = vmatpush.bf16.msra.mxu0 %v259
    %303 = vmatpush.bf16.msra.mxu0 %v257
    %304 = vmatpush.bf16.msra.mxu0 %v255
    %305 = vmatpush.bf16.msra.mxu0 %v253
    %306 = vmatmul.bf16.gmra.mxu0 %v202
    %v307 = vpop.f32.mrf.mxu0
    %v308 = vadd.f32 %v195, %v307
    %v309 = vpop.f32.mrf.mxu0
    %v310 = vadd.f32 %v195, %v309
    %311 = vdwg.mxu0
    %v312 = vmax.f32 %v294, 0.0
    %v313 = vmax.f32 %v308, 0.0
    %v314 = vmax.f32 %v296, 0.0
    %v315 = vmax.f32 %v310, 0.0
    %v316 = vpack.c.bf16 %v314, %v312
    %v317 = vpack.c.bf16 %v315, %v313
    %v318 = vld [vmem:[#allocation10] sm:$0xff]
    %v319 = vld [vmem:[#allocation10 + $0x8] sm:$0xff]
    %v320 = vld [vmem:[#allocation10 + $0x10] sm:$0xff]
    %v321 = vld [vmem:[#allocation10 + $0x18] sm:$0xff]
    %v322 = vld [vmem:[#allocation10 + $0x20] sm:$0xff]
    %v323 = vld [vmem:[#allocation10 + $0x28] sm:$0xff]
    %v324 = vld [vmem:[#allocation10 + $0x30] sm:$0xff]
    %v325 = vld [vmem:[#allocation10 + $0x38] sm:$0xff]
    %v326 = vld [vmem:[#allocation10 + $0x40] sm:$0xff]
    %v327 = vld [vmem:[#allocation10 + $0x48] sm:$0xff]
    %v328 = vld [vmem:[#allocation10 + $0x50] sm:$0xff]
    %v329 = vld [vmem:[#allocation10 + $0x58] sm:$0xff]
    %v330 = vld [vmem:[#allocation10 + $0x60] sm:$0xff]
    %v331 = vld [vmem:[#allocation10 + $0x68] sm:$0xff]
    %v332 = vld [vmem:[#allocation10 + $0x70] sm:$0xff]
    %v333 = vld [vmem:[#allocation10 + $0x78] sm:$0xff]
    %v334 = vld [vmem:[#allocation10 + $0x80] sm:$0xff]
    %v335 = vld [vmem:[#allocation10 + $0x88] sm:$0xff]
    %v336 = vld [vmem:[#allocation10 + $0x90] sm:$0xff]
    %v337 = vld [vmem:[#allocation10 + $0x98] sm:$0xff]
    %v338 = vld [vmem:[#allocation10 + $0xa0] sm:$0xff]
    %v339 = vld [vmem:[#allocation10 + $0xa8] sm:$0xff]
    %v340 = vld [vmem:[#allocation10 + $0xb0] sm:$0xff]
    %v341 = vld [vmem:[#allocation10 + $0xb8] sm:$0xff]
    %v342 = vld [vmem:[#allocation10 + $0xc0] sm:$0xff]
    %v343 = vld [vmem:[#allocation10 + $0xc8] sm:$0xff]
    %v344 = vld [vmem:[#allocation10 + $0xd0] sm:$0xff]
    %v345 = vld [vmem:[#allocation10 + $0xd8] sm:$0xff]
    %v346 = vld [vmem:[#allocation10 + $0xe0] sm:$0xff]
    %v347 = vld [vmem:[#allocation10 + $0xe8] sm:$0xff]
    %v348 = vld [vmem:[#allocation10 + $0xf0] sm:$0xff]
    %v349 = vld [vmem:[#allocation10 + $0xf8] sm:$0xff]
    %v350 = vld [vmem:[%s6] sm:$0x3]
    %v352 = vperm.slane %v350, 0
    %v353 = vperm.slane %v350, 1
    %v388 = vunpack.c.l.b16 %v318
    %v389 = vunpack.c.h.b16 %v318
    %v390 = vunpack.c.l.b16 %v319
    %v391 = vunpack.c.h.b16 %v319
    %v392 = vunpack.c.l.b16 %v320
    %v393 = vunpack.c.h.b16 %v320
    %v394 = vunpack.c.l.b16 %v321
    %v395 = vunpack.c.h.b16 %v321
    %v396 = vunpack.c.l.b16 %v322
    %v397 = vunpack.c.h.b16 %v322
    %v398 = vunpack.c.l.b16 %v323
    %v399 = vunpack.c.h.b16 %v323
    %v400 = vunpack.c.l.b16 %v324
    %v401 = vunpack.c.h.b16 %v324
    %v402 = vunpack.c.l.b16 %v325
    %v403 = vunpack.c.h.b16 %v325
    %v404 = vunpack.c.l.b16 %v326
    %v405 = vunpack.c.h.b16 %v326
    %v406 = vunpack.c.l.b16 %v327
    %v407 = vunpack.c.h.b16 %v327
    %v408 = vunpack.c.l.b16 %v328
    %v409 = vunpack.c.h.b16 %v328
    %v410 = vunpack.c.l.b16 %v329
    %v411 = vunpack.c.h.b16 %v329
    %v412 = vunpack.c.l.b16 %v330
    %v413 = vunpack.c.h.b16 %v330
    %v414 = vunpack.c.l.b16 %v331
    %v415 = vunpack.c.h.b16 %v331
    %v416 = vunpack.c.l.b16 %v332
    %v417 = vunpack.c.h.b16 %v332
    %v418 = vunpack.c.l.b16 %v333
    %v419 = vunpack.c.h.b16 %v333
    %v420 = vunpack.c.l.b16 %v334
    %v421 = vunpack.c.h.b16 %v334
    %v422 = vunpack.c.l.b16 %v335
    %v423 = vunpack.c.h.b16 %v335
    %v424 = vunpack.c.l.b16 %v336
    %v425 = vunpack.c.h.b16 %v336
    %v426 = vunpack.c.l.b16 %v337
    %v427 = vunpack.c.h.b16 %v337
    %v428 = vunpack.c.l.b16 %v338
    %v429 = vunpack.c.h.b16 %v338
    %v430 = vunpack.c.l.b16 %v339
    %v431 = vunpack.c.h.b16 %v339
    %v432 = vunpack.c.l.b16 %v340
    %v433 = vunpack.c.h.b16 %v340
    %v434 = vunpack.c.l.b16 %v341
    %v435 = vunpack.c.h.b16 %v341
    %v436 = vunpack.c.l.b16 %v342
    %v437 = vunpack.c.h.b16 %v342
    %v438 = vunpack.c.l.b16 %v343
    %v439 = vunpack.c.h.b16 %v343
    %v440 = vunpack.c.l.b16 %v344
    %v441 = vunpack.c.h.b16 %v344
    %v442 = vunpack.c.l.b16 %v345
    %v443 = vunpack.c.h.b16 %v345
    %v444 = vunpack.c.l.b16 %v346
    %v445 = vunpack.c.h.b16 %v346
    %v446 = vunpack.c.l.b16 %v347
    %v447 = vunpack.c.h.b16 %v347
    %v448 = vunpack.c.l.b16 %v348
    %v449 = vunpack.c.h.b16 %v348
    %v450 = vunpack.c.l.b16 %v349
    %v451 = vunpack.c.h.b16 %v349
    %v452 = vpack.c.b16 %v390, %v388
    %v453 = vpack.c.b16 %v391, %v389
    %v454 = vpack.c.b16 %v394, %v392
    %v455 = vpack.c.b16 %v395, %v393
    %v456 = vpack.c.b16 %v398, %v396
    %v457 = vpack.c.b16 %v399, %v397
    %v458 = vpack.c.b16 %v402, %v400
    %v459 = vpack.c.b16 %v403, %v401
    %v460 = vpack.c.b16 %v406, %v404
    %v461 = vpack.c.b16 %v407, %v405
    %v462 = vpack.c.b16 %v410, %v408
    %v463 = vpack.c.b16 %v411, %v409
    %v464 = vpack.c.b16 %v414, %v412
    %v465 = vpack.c.b16 %v415, %v413
    %v466 = vpack.c.b16 %v418, %v416
    %v467 = vpack.c.b16 %v419, %v417
    %v468 = vpack.c.b16 %v422, %v420
    %v469 = vpack.c.b16 %v423, %v421
    %v470 = vpack.c.b16 %v426, %v424
    %v471 = vpack.c.b16 %v427, %v425
    %v472 = vpack.c.b16 %v430, %v428
    %v473 = vpack.c.b16 %v431, %v429
    %v474 = vpack.c.b16 %v434, %v432
    %v475 = vpack.c.b16 %v435, %v433
    %v476 = vpack.c.b16 %v438, %v436
    %v477 = vpack.c.b16 %v439, %v437
    %v478 = vpack.c.b16 %v442, %v440
    %v479 = vpack.c.b16 %v443, %v441
    %v480 = vpack.c.b16 %v446, %v444
    %v481 = vpack.c.b16 %v447, %v445
    %v482 = vpack.c.b16 %v450, %v448
    %v483 = vpack.c.b16 %v451, %v449
    %516 = vmatpush.bf16.msra.mxu0 %v466
    %517 = vmatpush.bf16.msra.mxu0 %v464
    %518 = vmatpush.bf16.msra.mxu0 %v462
    %519 = vmatpush.bf16.msra.mxu0 %v460
    %520 = vmatpush.bf16.msra.mxu0 %v458
    %521 = vmatpush.bf16.msra.mxu0 %v456
    %522 = vmatpush.bf16.msra.mxu0 %v454
    %523 = vmatpush.bf16.msra.mxu0 %v452
    %524 = vmatmul.bf16.gmra.mxu0 %v316
    %v525 = vpop.f32.mrf.mxu0
    %v526 = vadd.f32 %v352, %v525
    %v527 = vpop.f32.mrf.mxu0
    %v528 = vadd.f32 %v352, %v527
    %529 = vdwg.mxu0
    %530 = vmatpush.bf16.msra.mxu0 %v482
    %531 = vmatpush.bf16.msra.mxu0 %v480
    %532 = vmatpush.bf16.msra.mxu0 %v478
    %533 = vmatpush.bf16.msra.mxu0 %v476
    %534 = vmatpush.bf16.msra.mxu0 %v474
    %535 = vmatpush.bf16.msra.mxu0 %v472
    %536 = vmatpush.bf16.msra.mxu0 %v470
    %537 = vmatpush.bf16.msra.mxu0 %v468
    %538 = vmatmul.bf16.gmra.mxu0 %v317
    %v539 = vpop.f32.mrf.mxu0
    %v540 = vadd.f32 %v526, %v539
    %v541 = vpop.f32.mrf.mxu0
    %v542 = vadd.f32 %v528, %v541
    %543 = vdwg.mxu0
    %544 = vmatpush.bf16.msra.mxu0 %v467
    %545 = vmatpush.bf16.msra.mxu0 %v465
    %546 = vmatpush.bf16.msra.mxu0 %v463
    %547 = vmatpush.bf16.msra.mxu0 %v461
    %548 = vmatpush.bf16.msra.mxu0 %v459
    %549 = vmatpush.bf16.msra.mxu0 %v457
    %550 = vmatpush.bf16.msra.mxu0 %v455
    %551 = vmatpush.bf16.msra.mxu0 %v453
    %552 = vmatmul.bf16.gmra.mxu0 %v316
    %v553 = vpop.f32.mrf.mxu0
    %v554 = vadd.f32 %v353, %v553
    %v555 = vpop.f32.mrf.mxu0
    %v556 = vadd.f32 %v353, %v555
    %557 = vdwg.mxu0
    %558 = vmatpush.bf16.msra.mxu0 %v483
    %559 = vmatpush.bf16.msra.mxu0 %v481
    %560 = vmatpush.bf16.msra.mxu0 %v479
    %561 = vmatpush.bf16.msra.mxu0 %v477
    %562 = vmatpush.bf16.msra.mxu0 %v475
    %563 = vmatpush.bf16.msra.mxu0 %v473
    %564 = vmatpush.bf16.msra.mxu0 %v471
    %565 = vmatpush.bf16.msra.mxu0 %v469
    %566 = vmatmul.bf16.gmra.mxu0 %v317
    %v567 = vpop.f32.mrf.mxu0
    %v568 = vadd.f32 %v554, %v567
    %v569 = vpop.f32.mrf.mxu0
    %v570 = vadd.f32 %v556, %v569
    %571 = vdwg.mxu0
    %v572 = vld [vmem:[#allocation11] sm:$0xff]
    %v573 = vld [vmem:[#allocation11 + $0x8] sm:$0xff]
    %v574 = vld [vmem:[#allocation11 + $0x10] sm:$0xff]
    %v575 = vld [vmem:[#allocation11 + $0x18] sm:$0xff]
    %v576 = vld [vmem:[#allocation11 + $0x20] sm:$0xff]
    %v577 = vld [vmem:[#allocation11 + $0x28] sm:$0xff]
    %v578 = vld [vmem:[#allocation11 + $0x30] sm:$0xff]
    %v579 = vld [vmem:[#allocation11 + $0x38] sm:$0xff]
    %v580 = vld [vmem:[#allocation11 + $0x40] sm:$0xff]
    %v581 = vld [vmem:[#allocation11 + $0x48] sm:$0xff]
    %v582 = vld [vmem:[#allocation11 + $0x50] sm:$0xff]
    %v583 = vld [vmem:[#allocation11 + $0x58] sm:$0xff]
    %v584 = vld [vmem:[#allocation11 + $0x60] sm:$0xff]
    %v585 = vld [vmem:[#allocation11 + $0x68] sm:$0xff]
    %v586 = vld [vmem:[#allocation11 + $0x70] sm:$0xff]
    %v587 = vld [vmem:[#allocation11 + $0x78] sm:$0xff]
    %v588 = vld [vmem:[%s8] sm:$0x3]
    %v590 = vperm.slane %v588, 0
    %v591 = vperm.slane %v588, 1
    %v596 = vunpack.c.l.b16 %v172
    %v597 = vunpack.c.l.b16 %v173
    %v598 = vpack.c.b16 %v597, %v596
    %v616 = vunpack.c.l.b16 %v572
    %v617 = vunpack.c.h.b16 %v572
    %v618 = vunpack.c.l.b16 %v573
    %v619 = vunpack.c.h.b16 %v573
    %v620 = vunpack.c.l.b16 %v574
    %v621 = vunpack.c.h.b16 %v574
    %v622 = vunpack.c.l.b16 %v575
    %v623 = vunpack.c.h.b16 %v575
    %v624 = vunpack.c.l.b16 %v576
    %v625 = vunpack.c.h.b16 %v576
    %v626 = vunpack.c.l.b16 %v577
    %v627 = vunpack.c.h.b16 %v577
    %v628 = vunpack.c.l.b16 %v578
    %v629 = vunpack.c.h.b16 %v578
    %v630 = vunpack.c.l.b16 %v579
    %v631 = vunpack.c.h.b16 %v579
    %v632 = vunpack.c.l.b16 %v580
    %v633 = vunpack.c.h.b16 %v580
    %v634 = vunpack.c.l.b16 %v581
    %v635 = vunpack.c.h.b16 %v581
    %v636 = vunpack.c.l.b16 %v582
    %v637 = vunpack.c.h.b16 %v582
    %v638 = vunpack.c.l.b16 %v583
    %v639 = vunpack.c.h.b16 %v583
    %v640 = vunpack.c.l.b16 %v584
    %v641 = vunpack.c.h.b16 %v584
    %v642 = vunpack.c.l.b16 %v585
    %v643 = vunpack.c.h.b16 %v585
    %v644 = vunpack.c.l.b16 %v586
    %v645 = vunpack.c.h.b16 %v586
    %v646 = vunpack.c.l.b16 %v587
    %v647 = vunpack.c.h.b16 %v587
    %v648 = vpack.c.b16 %v618, %v616
    %v649 = vpack.c.b16 %v619, %v617
    %v650 = vpack.c.b16 %v622, %v620
    %v651 = vpack.c.b16 %v623, %v621
    %v652 = vpack.c.b16 %v626, %v624
    %v653 = vpack.c.b16 %v627, %v625
    %v654 = vpack.c.b16 %v630, %v628
    %v655 = vpack.c.b16 %v631, %v629
    %v656 = vpack.c.b16 %v634, %v632
    %v657 = vpack.c.b16 %v635, %v633
    %v658 = vpack.c.b16 %v638, %v636
    %v659 = vpack.c.b16 %v639, %v637
    %v660 = vpack.c.b16 %v642, %v640
    %v661 = vpack.c.b16 %v643, %v641
    %v662 = vpack.c.b16 %v646, %v644
    %v663 = vpack.c.b16 %v647, %v645
    %680 = vmatpush.bf16.msra.mxu0 %v662
    %681 = vmatpush.bf16.msra.mxu0 %v660
    %682 = vmatpush.bf16.msra.mxu0 %v658
    %683 = vmatpush.bf16.msra.mxu0 %v656
    %684 = vmatpush.bf16.msra.mxu0 %v654
    %685 = vmatpush.bf16.msra.mxu0 %v652
    %686 = vmatpush.bf16.msra.mxu0 %v650
    %687 = vmatpush.bf16.msra.mxu0 %v648
    %688 = vmatmul.bf16.gmra.mxu0 %v598
    %v689 = vpop.f32.mrf.mxu0
    %v690 = vadd.f32 %v590, %v689
    %v691 = vpop.f32.mrf.mxu0
    %v692 = vadd.f32 %v590, %v691
    %693 = vdwg.mxu0
    %694 = vmatpush.bf16.msra.mxu0 %v663
    %695 = vmatpush.bf16.msra.mxu0 %v661
    %696 = vmatpush.bf16.msra.mxu0 %v659
    %697 = vmatpush.bf16.msra.mxu0 %v657
    %698 = vmatpush.bf16.msra.mxu0 %v655
    %699 = vmatpush.bf16.msra.mxu0 %v653
    %700 = vmatpush.bf16.msra.mxu0 %v651
    %701 = vmatpush.bf16.msra.mxu0 %v649
    %702 = vmatmul.bf16.gmra.mxu0 %v598
    %v703 = vpop.f32.mrf.mxu0
    %v704 = vadd.f32 %v591, %v703
    %v705 = vpop.f32.mrf.mxu0
    %v706 = vadd.f32 %v591, %v705
    %707 = vdwg.mxu0
    %v708 = vmax.f32 %v690, 0.0
    %v709 = vmax.f32 %v704, 0.0
    %v710 = vmax.f32 %v692, 0.0
    %v711 = vmax.f32 %v706, 0.0
    %v712 = vpack.c.bf16 %v710, %v708
    %v713 = vpack.c.bf16 %v711, %v709
    %v714 = vld [vmem:[#allocation13] sm:$0xff]
    %v715 = vld [vmem:[#allocation13 + $0x8] sm:$0xff]
    %v716 = vld [vmem:[#allocation13 + $0x10] sm:$0xff]
    %v717 = vld [vmem:[#allocation13 + $0x18] sm:$0xff]
    %v718 = vld [vmem:[#allocation13 + $0x20] sm:$0xff]
    %v719 = vld [vmem:[#allocation13 + $0x28] sm:$0xff]
    %v720 = vld [vmem:[#allocation13 + $0x30] sm:$0xff]
    %v721 = vld [vmem:[#allocation13 + $0x38] sm:$0xff]
    %v722 = vld [vmem:[#allocation13 + $0x40] sm:$0xff]
    %v723 = vld [vmem:[#allocation13 + $0x48] sm:$0xff]
    %v724 = vld [vmem:[#allocation13 + $0x50] sm:$0xff]
    %v725 = vld [vmem:[#allocation13 + $0x58] sm:$0xff]
    %v726 = vld [vmem:[#allocation13 + $0x60] sm:$0xff]
    %v727 = vld [vmem:[#allocation13 + $0x68] sm:$0xff]
    %v728 = vld [vmem:[#allocation13 + $0x70] sm:$0xff]
    %v729 = vld [vmem:[#allocation13 + $0x78] sm:$0xff]
    %v730 = vld [vmem:[#allocation13 + $0x80] sm:$0xff]
    %v731 = vld [vmem:[#allocation13 + $0x88] sm:$0xff]
    %v732 = vld [vmem:[#allocation13 + $0x90] sm:$0xff]
    %v733 = vld [vmem:[#allocation13 + $0x98] sm:$0xff]
    %v734 = vld [vmem:[#allocation13 + $0xa0] sm:$0xff]
    %v735 = vld [vmem:[#allocation13 + $0xa8] sm:$0xff]
    %v736 = vld [vmem:[#allocation13 + $0xb0] sm:$0xff]
    %v737 = vld [vmem:[#allocation13 + $0xb8] sm:$0xff]
    %v738 = vld [vmem:[#allocation13 + $0xc0] sm:$0xff]
    %v739 = vld [vmem:[#allocation13 + $0xc8] sm:$0xff]
    %v740 = vld [vmem:[#allocation13 + $0xd0] sm:$0xff]
    %v741 = vld [vmem:[#allocation13 + $0xd8] sm:$0xff]
    %v742 = vld [vmem:[#allocation13 + $0xe0] sm:$0xff]
    %v743 = vld [vmem:[#allocation13 + $0xe8] sm:$0xff]
    %v744 = vld [vmem:[#allocation13 + $0xf0] sm:$0xff]
    %v745 = vld [vmem:[#allocation13 + $0xf8] sm:$0xff]
    %v746 = vld [vmem:[%s10] sm:$0x3]
    %v748 = vperm.slane %v746, 0
    %v749 = vperm.slane %v746, 1
    %v784 = vunpack.c.l.b16 %v714
    %v785 = vunpack.c.h.b16 %v714
    %v786 = vunpack.c.l.b16 %v715
    %v787 = vunpack.c.h.b16 %v715
    %v788 = vunpack.c.l.b16 %v716
    %v789 = vunpack.c.h.b16 %v716
    %v790 = vunpack.c.l.b16 %v717
    %v791 = vunpack.c.h.b16 %v717
    %v792 = vunpack.c.l.b16 %v718
    %v793 = vunpack.c.h.b16 %v718
    %v794 = vunpack.c.l.b16 %v719
    %v795 = vunpack.c.h.b16 %v719
    %v796 = vunpack.c.l.b16 %v720
    %v797 = vunpack.c.h.b16 %v720
    %v798 = vunpack.c.l.b16 %v721
    %v799 = vunpack.c.h.b16 %v721
    %v800 = vunpack.c.l.b16 %v722
    %v801 = vunpack.c.h.b16 %v722
    %v802 = vunpack.c.l.b16 %v723
    %v803 = vunpack.c.h.b16 %v723
    %v804 = vunpack.c.l.b16 %v724
    %v805 = vunpack.c.h.b16 %v724
    %v806 = vunpack.c.l.b16 %v725
    %v807 = vunpack.c.h.b16 %v725
    %v808 = vunpack.c.l.b16 %v726
    %v809 = vunpack.c.h.b16 %v726
    %v810 = vunpack.c.l.b16 %v727
    %v811 = vunpack.c.h.b16 %v727
    %v812 = vunpack.c.l.b16 %v728
    %v813 = vunpack.c.h.b16 %v728
    %v814 = vunpack.c.l.b16 %v729
    %v815 = vunpack.c.h.b16 %v729
    %v816 = vunpack.c.l.b16 %v730
    %v817 = vunpack.c.h.b16 %v730
    %v818 = vunpack.c.l.b16 %v731
    %v819 = vunpack.c.h.b16 %v731
    %v820 = vunpack.c.l.b16 %v732
    %v821 = vunpack.c.h.b16 %v732
    %v822 = vunpack.c.l.b16 %v733
    %v823 = vunpack.c.h.b16 %v733
    %v824 = vunpack.c.l.b16 %v734
    %v825 = vunpack.c.h.b16 %v734
    %v826 = vunpack.c.l.b16 %v735
    %v827 = vunpack.c.h.b16 %v735
    %v828 = vunpack.c.l.b16 %v736
    %v829 = vunpack.c.h.b16 %v736
    %v830 = vunpack.c.l.b16 %v737
    %v831 = vunpack.c.h.b16 %v737
    %v832 = vunpack.c.l.b16 %v738
    %v833 = vunpack.c.h.b16 %v738
    %v834 = vunpack.c.l.b16 %v739
    %v835 = vunpack.c.h.b16 %v739
    %v836 = vunpack.c.l.b16 %v740
    %v837 = vunpack.c.h.b16 %v740
    %v838 = vunpack.c.l.b16 %v741
    %v839 = vunpack.c.h.b16 %v741
    %v840 = vunpack.c.l.b16 %v742
    %v841 = vunpack.c.h.b16 %v742
    %v842 = vunpack.c.l.b16 %v743
    %v843 = vunpack.c.h.b16 %v743
    %v844 = vunpack.c.l.b16 %v744
    %v845 = vunpack.c.h.b16 %v744
    %v846 = vunpack.c.l.b16 %v745
    %v847 = vunpack.c.h.b16 %v745
    %v848 = vpack.c.b16 %v786, %v784
    %v849 = vpack.c.b16 %v787, %v785
    %v850 = vpack.c.b16 %v790, %v788
    %v851 = vpack.c.b16 %v791, %v789
    %v852 = vpack.c.b16 %v794, %v792
    %v853 = vpack.c.b16 %v795, %v793
    %v854 = vpack.c.b16 %v798, %v796
    %v855 = vpack.c.b16 %v799, %v797
    %v856 = vpack.c.b16 %v802, %v800
    %v857 = vpack.c.b16 %v803, %v801
    %v858 = vpack.c.b16 %v806, %v804
    %v859 = vpack.c.b16 %v807, %v805
    %v860 = vpack.c.b16 %v810, %v808
    %v861 = vpack.c.b16 %v811, %v809
    %v862 = vpack.c.b16 %v814, %v812
    %v863 = vpack.c.b16 %v815, %v813
    %v864 = vpack.c.b16 %v818, %v816
    %v865 = vpack.c.b16 %v819, %v817
    %v866 = vpack.c.b16 %v822, %v820
    %v867 = vpack.c.b16 %v823, %v821
    %v868 = vpack.c.b16 %v826, %v824
    %v869 = vpack.c.b16 %v827, %v825
    %v870 = vpack.c.b16 %v830, %v828
    %v871 = vpack.c.b16 %v831, %v829
    %v872 = vpack.c.b16 %v834, %v832
    %v873 = vpack.c.b16 %v835, %v833
    %v874 = vpack.c.b16 %v838, %v836
    %v875 = vpack.c.b16 %v839, %v837
    %v876 = vpack.c.b16 %v842, %v840
    %v877 = vpack.c.b16 %v843, %v841
    %v878 = vpack.c.b16 %v846, %v844
    %v879 = vpack.c.b16 %v847, %v845
    %912 = vmatpush.bf16.msra.mxu0 %v862
    %913 = vmatpush.bf16.msra.mxu0 %v860
    %914 = vmatpush.bf16.msra.mxu0 %v858
    %915 = vmatpush.bf16.msra.mxu0 %v856
    %916 = vmatpush.bf16.msra.mxu0 %v854
    %917 = vmatpush.bf16.msra.mxu0 %v852
    %918 = vmatpush.bf16.msra.mxu0 %v850
    %919 = vmatpush.bf16.msra.mxu0 %v848
    %920 = vmatmul.bf16.gmra.mxu0 %v712
    %v921 = vpop.f32.mrf.mxu0
    %v922 = vadd.f32 %v748, %v921
    %v923 = vpop.f32.mrf.mxu0
    %v924 = vadd.f32 %v748, %v923
    %925 = vdwg.mxu0
    %926 = vmatpush.bf16.msra.mxu0 %v878
    %927 = vmatpush.bf16.msra.mxu0 %v876
    %928 = vmatpush.bf16.msra.mxu0 %v874
    %929 = vmatpush.bf16.msra.mxu0 %v872
    %930 = vmatpush.bf16.msra.mxu0 %v870
    %931 = vmatpush.bf16.msra.mxu0 %v868
    %932 = vmatpush.bf16.msra.mxu0 %v866
    %933 = vmatpush.bf16.msra.mxu0 %v864
    %934 = vmatmul.bf16.gmra.mxu0 %v713
    %v935 = vpop.f32.mrf.mxu0
    %v936 = vadd.f32 %v922, %v935
    %v937 = vpop.f32.mrf.mxu0
    %v938 = vadd.f32 %v924, %v937
    %939 = vdwg.mxu0
    %940 = vmatpush.bf16.msra.mxu0 %v863
    %941 = vmatpush.bf16.msra.mxu0 %v861
    %942 = vmatpush.bf16.msra.mxu0 %v859
    %943 = vmatpush.bf16.msra.mxu0 %v857
    %944 = vmatpush.bf16.msra.mxu0 %v855
    %945 = vmatpush.bf16.msra.mxu0 %v853
    %946 = vmatpush.bf16.msra.mxu0 %v851
    %947 = vmatpush.bf16.msra.mxu0 %v849
    %948 = vmatmul.bf16.gmra.mxu0 %v712
    %v949 = vpop.f32.mrf.mxu0
    %v950 = vadd.f32 %v749, %v949
    %v951 = vpop.f32.mrf.mxu0
    %v952 = vadd.f32 %v749, %v951
    %953 = vdwg.mxu0
    %954 = vmatpush.bf16.msra.mxu0 %v879
    %955 = vmatpush.bf16.msra.mxu0 %v877
    %956 = vmatpush.bf16.msra.mxu0 %v875
    %957 = vmatpush.bf16.msra.mxu0 %v873
    %958 = vmatpush.bf16.msra.mxu0 %v871
    %959 = vmatpush.bf16.msra.mxu0 %v869
    %960 = vmatpush.bf16.msra.mxu0 %v867
    %961 = vmatpush.bf16.msra.mxu0 %v865
    %962 = vmatmul.bf16.gmra.mxu0 %v713
    %v963 = vpop.f32.mrf.mxu0
    %v964 = vadd.f32 %v950, %v963
    %v965 = vpop.f32.mrf.mxu0
    %v966 = vadd.f32 %v952, %v965
    %967 = vdwg.mxu0
    %v968 = vmul.f32 %v540, %v936
    %v969 = vmul.f32 %v568, %v964
    %v970 = vmul.f32 %v542, %v938
    %v971 = vmul.f32 %v570, %v966
    %v972 = vpack.c.bf16 %v970, %v968
    %v973 = vpack.c.bf16 %v971, %v969
    %v974 = vld [vmem:[#allocation14] sm:$0xf]
    %v975 = vld [vmem:[#allocation14 + $0x4] sm:$0xf]
    %v976 = vld [vmem:[#allocation14 + $0x8] sm:$0xf]
    %v977 = vld [vmem:[#allocation14 + $0xc] sm:$0xf]
    %v978 = vld [vmem:[#allocation14 + $0x10] sm:$0xf]
    %v979 = vld [vmem:[#allocation14 + $0x14] sm:$0xf]
    %v980 = vld [vmem:[#allocation14 + $0x18] sm:$0xf]
    %v981 = vld [vmem:[#allocation14 + $0x1c] sm:$0xf]
    %v982 = vld [vmem:[#allocation14 + $0x20] sm:$0xf]
    %v983 = vld [vmem:[#allocation14 + $0x24] sm:$0xf]
    %v984 = vld [vmem:[#allocation14 + $0x28] sm:$0xf]
    %v985 = vld [vmem:[#allocation14 + $0x2c] sm:$0xf]
    %v986 = vld [vmem:[#allocation14 + $0x30] sm:$0xf]
    %v987 = vld [vmem:[#allocation14 + $0x34] sm:$0xf]
    %v988 = vld [vmem:[#allocation14 + $0x38] sm:$0xf]
    %v989 = vld [vmem:[#allocation14 + $0x3c] sm:$0xf]
    %v990 = vld [vmem:[#allocation14 + $0x40] sm:$0xf]
    %v991 = vld [vmem:[#allocation14 + $0x44] sm:$0xf]
    %v992 = vld [vmem:[#allocation14 + $0x48] sm:$0xf]
    %v993 = vld [vmem:[#allocation14 + $0x4c] sm:$0xf]
    %v994 = vld [vmem:[#allocation14 + $0x50] sm:$0xf]
    %v995 = vld [vmem:[#allocation14 + $0x54] sm:$0xf]
    %v996 = vld [vmem:[#allocation14 + $0x58] sm:$0xf]
    %v997 = vld [vmem:[#allocation14 + $0x5c] sm:$0xf]
    %v998 = vld [vmem:[#allocation14 + $0x60] sm:$0xf]
    %v999 = vld [vmem:[#allocation14 + $0x64] sm:$0xf]
    %v1000 = vld [vmem:[#allocation14 + $0x68] sm:$0xf]
    %v1001 = vld [vmem:[#allocation14 + $0x6c] sm:$0xf]
    %v1002 = vld [vmem:[#allocation14 + $0x70] sm:$0xf]
    %v1003 = vld [vmem:[#allocation14 + $0x74] sm:$0xf]
    %v1004 = vld [vmem:[#allocation14 + $0x78] sm:$0xf]
    %v1005 = vld [vmem:[#allocation14 + $0x7c] sm:$0xf]
    %v1006 = vld [vmem:[%s12] sm:$0x1]
    %v1008 = vperm.slane %v1006, 0
    %v1042 = vunpack.c.l.b16 %v974
    %v1043 = vunpack.c.l.b16 %v975
    %v1044 = vunpack.c.l.b16 %v976
    %v1045 = vunpack.c.l.b16 %v977
    %v1046 = vunpack.c.l.b16 %v978
    %v1047 = vunpack.c.l.b16 %v979
    %v1048 = vunpack.c.l.b16 %v980
    %v1049 = vunpack.c.l.b16 %v981
    %v1050 = vunpack.c.l.b16 %v982
    %v1051 = vunpack.c.l.b16 %v983
    %v1052 = vunpack.c.l.b16 %v984
    %v1053 = vunpack.c.l.b16 %v985
    %v1054 = vunpack.c.l.b16 %v986
    %v1055 = vunpack.c.l.b16 %v987
    %v1056 = vunpack.c.l.b16 %v988
    %v1057 = vunpack.c.l.b16 %v989
    %v1058 = vunpack.c.l.b16 %v990
    %v1059 = vunpack.c.l.b16 %v991
    %v1060 = vunpack.c.l.b16 %v992
    %v1061 = vunpack.c.l.b16 %v993
    %v1062 = vunpack.c.l.b16 %v994
    %v1063 = vunpack.c.l.b16 %v995
    %v1064 = vunpack.c.l.b16 %v996
    %v1065 = vunpack.c.l.b16 %v997
    %v1066 = vunpack.c.l.b16 %v998
    %v1067 = vunpack.c.l.b16 %v999
    %v1068 = vunpack.c.l.b16 %v1000
    %v1069 = vunpack.c.l.b16 %v1001
    %v1070 = vunpack.c.l.b16 %v1002
    %v1071 = vunpack.c.l.b16 %v1003
    %v1072 = vunpack.c.l.b16 %v1004
    %v1073 = vunpack.c.l.b16 %v1005
    %v1074 = vpack.c.b16 %v1043, %v1042
    %v1075 = vpack.c.b16 %v1045, %v1044
    %v1076 = vpack.c.b16 %v1047, %v1046
    %v1077 = vpack.c.b16 %v1049, %v1048
    %v1078 = vpack.c.b16 %v1051, %v1050
    %v1079 = vpack.c.b16 %v1053, %v1052
    %v1080 = vpack.c.b16 %v1055, %v1054
    %v1081 = vpack.c.b16 %v1057, %v1056
    %v1082 = vpack.c.b16 %v1059, %v1058
    %v1083 = vpack.c.b16 %v1061, %v1060
    %v1084 = vpack.c.b16 %v1063, %v1062
    %v1085 = vpack.c.b16 %v1065, %v1064
    %v1086 = vpack.c.b16 %v1067, %v1066
    %v1087 = vpack.c.b16 %v1069, %v1068
    %v1088 = vpack.c.b16 %v1071, %v1070
    %v1089 = vpack.c.b16 %v1073, %v1072
    %1106 = vmatpush.bf16.msra.mxu0 %v1081
    %1107 = vmatpush.bf16.msra.mxu0 %v1080
    %1108 = vmatpush.bf16.msra.mxu0 %v1079
    %1109 = vmatpush.bf16.msra.mxu0 %v1078
    %1110 = vmatpush.bf16.msra.mxu0 %v1077
    %1111 = vmatpush.bf16.msra.mxu0 %v1076
    %1112 = vmatpush.bf16.msra.mxu0 %v1075
    %1113 = vmatpush.bf16.msra.mxu0 %v1074
    %1114 = vmatmul.bf16.gmra.mxu0 %v972
    %v1115 = vpop.f32.mrf.mxu0
    %v1116 = vadd.f32 %v1008, %v1115
    %v1117 = vpop.f32.mrf.mxu0
    %v1118 = vadd.f32 %v1008, %v1117
    %1119 = vdwg.mxu0
    %1120 = vmatpush.bf16.msra.mxu0 %v1089
    %1121 = vmatpush.bf16.msra.mxu0 %v1088
    %1122 = vmatpush.bf16.msra.mxu0 %v1087
    %1123 = vmatpush.bf16.msra.mxu0 %v1086
    %1124 = vmatpush.bf16.msra.mxu0 %v1085
    %1125 = vmatpush.bf16.msra.mxu0 %v1084
    %1126 = vmatpush.bf16.msra.mxu0 %v1083
    %1127 = vmatpush.bf16.msra.mxu0 %v1082
    %1128 = vmatmul.bf16.gmra.mxu0 %v973
    %v1129 = vpop.f32.mrf.mxu0
    %v1130 = vadd.f32 %v1116, %v1129
    %v1131 = vpop.f32.mrf.mxu0
    %v1132 = vadd.f32 %v1118, %v1131
    %1133 = vdwg.mxu0
    %1134 = vmax.xlane.f32.xlu0 %v1130
    %v1135 = vpop.xlane.xlu0 %1134
    %1136 = vmax.xlane.f32.xlu0 %v1132
    %v1137 = vpop.xlane.xlu0 %1136
    %v1138 = vsub.f32 %v1130, %v1135
    %v1139 = vsub.f32 %v1132, %v1137
    %v1140 = vmul.f32 %v1138, 1.442695
    %v1141 = vpow.pop %v1140
    %v1142 = vmul.f32 %v1139, 1.442695
    %v1143 = vpow.pop %v1142
    %1144 = vadd.xlane.f32.xlu0 %v1141
    %v1145 = vpop.xlane.xlu0 %1144
    %1146 = vadd.xlane.f32.xlu0 %v1143
    %v1147 = vpop.xlane.xlu0 %1146
    %v1148 = vrcp.pop %v1145
    %v1149 = vrcp.pop %v1147
    %v1150 = vmul.f32 %v1141, %v1148
    %v1151 = vmul.f32 %v1143, %v1149
    %v1152 = vunpack.c.l.bf16 %v174
    %v1153 = vunpack.c.l.bf16 %v175
    %v1154 = vmul.f32 %v1150, %v1152
    %v1155 = vmul.f32 %v1151, %v1153
    %1156 = vst [vmem:[#allocation16] sm:$0xff] %v1154
    %1157 = vst [vmem:[#allocation16 + $0x8] sm:$0xff] %v1155
    // Predicated region
    $region86: #{tpu_custom_call.1} parent=1 // pred_check
      _
    $region87: #{tpu_custom_call.1} parent=1 // pred_check_branch
      %1159 = sbr.rel (0) target = $region89
    $region88: #{tpu_custom_call.1} parent=1 // pred_region
      %1161 = vsyncadd [#allocation4], 0
      %s1162 = sshll.u32 [#allocation16], 4
      %s1163 = int_to_ptr.vmem [resolvable:$true] %s1162
      %s1164 = sshll.u32 %s13, 4
      %s1165 = int_to_ptr.hbm [resolvable:$true] %s1164
      %1170 = dma.vmem_to_hbm [thread:$0]  %s1163, 256, %s1165, [#allocation4], 128, 128, 8
    $region89: #{tpu_custom_call.1} parent=1 // pred_fallthru
      _
    // Predicated region
    $region90: #{tpu_custom_call.1} parent=1 // pred_check
      _
    $region91: #{tpu_custom_call.1} parent=1 // pred_check_branch
      %1172 = sbr.rel (0) target = $region93
    $region92: #{tpu_custom_call.1} parent=1 // pred_region
      %1174 = dma.done [#allocation4], 256
    $region93: #{tpu_custom_call.1} parent=1 // pred_fallthru
      _
    %1175 = vsyncpa [#allocation3], 1
    %1176 = vsyncpa [#allocation6], 1
    %1177 = vsyncpa [#allocation9], 1
    %1178 = vsyncpa [#allocation12], 1
    %1179 = vsyncpa [#allocation15], 1
    %1180 = vsyncpa [#allocation4], 1

</llo_original>
